<compile_context>
chip_gen: v7x
topology: tpu7x:2x2x1
jax: 0.10.0
libtpu: 0.0.40
codegen_flags: <defaults>
</compile_context>

<pallas_src>
import functools

import numpy as np

import jax
import jax.numpy as jnp
from jax.experimental import pallas as pl
from jax.experimental.pallas import tpu as pltpu


def _round_up(x, m):
    return (x + m - 1) // m * m


def _gelu_exact(x):
    # Matches PyTorch nn.GELU() / ACT2FN["gelu"] (erf-based, not tanh approx).
    return 0.5 * x * (1.0 + jax.lax.erf(x * np.float32(1.0 / np.sqrt(2.0))))


@functools.lru_cache(maxsize=1)
def _chip_info():
    """Returns (tpu_generation, physical VMEM bytes per core)."""
    kind = ""
    try:
        kind = jax.devices()[0].device_kind.lower()
    except Exception:
        pass
    if "v7" in kind:
        gen = 7
    elif "v6" in kind:
        gen = 6
    elif "v5" in kind:
        gen = 5
    else:
        gen = 6  # conservative default
    default_vmem = 64 * 1024 * 1024 if gen >= 7 else 128 * 1024 * 1024
    try:
        vmem = int(pltpu.get_tpu_info().vmem_capacity_bytes)
    except Exception:
        vmem = default_vmem
    return gen, vmem


def neural_mlp_kernel(x_ref, wu_ref, bu_ref, wd_ref, bd_ref, o_ref, *scratch,
                      tk, use_scratch):
    # Grid: (row tiles, inter chunks).  The inter-chunk axis (last) is the
    # reduction axis; the output block index is constant along it, so the
    # output tile stays resident and can itself serve as the accumulator
    # when it is already f32.
    acc_ref = scratch[0] if use_scratch else o_ref
    k = pl.program_id(1)

    @pl.when(k == 0)
    def _():
        acc_ref[...] = jnp.zeros_like(acc_ref)

    # Up-projection chunk (MXU, f32 accumulation) + bias + exact GELU (f32).
    up = jnp.dot(x_ref[...], wu_ref[...], preferred_element_type=jnp.float32)
    off = pl.multiple_of(k * tk, tk)
    up = up + bu_ref[:, pl.ds(off, tk)].astype(jnp.float32)
    h = _gelu_exact(up)

    # Partial down-projection of this chunk, accumulated in f32.
    acc_ref[...] += jnp.dot(
        h.astype(wd_ref.dtype), wd_ref[...], preferred_element_type=jnp.float32
    )

    # Finalize: add the down-proj bias once, cast, store lane-dense tile.
    @pl.when(k == pl.num_programs(1) - 1)
    def _():
        o_ref[...] = (acc_ref[...] + bd_ref[...].astype(jnp.float32)).astype(
            o_ref.dtype
        )


@functools.partial(jax.jit, static_argnames=("tm", "tk"))
def neural_mlp(x, w_up, b_up, w_down, b_down, *, tm=None, tk=None):
    """NeuralMLP forward.  x: (..., hidden); weights pre-transposed to (in, out).

    TODO(synk): nn.Dropout is identity in eval mode; training-mode dropout
    (pltpu.prng_random_bits mask) is intentionally not applied here.
    """
    orig_shape = x.shape
    hidden = orig_shape[-1]
    inter = w_up.shape[1]

    x2 = x.reshape(-1, hidden)
    n = x2.shape[0]

    gen, vmem_phys = _chip_info()
    vmem_cap = int(0.8 * vmem_phys)  # ~100 MiB on v5e/v6e, ~51 MiB on v7x

    x_isz = jnp.dtype(x.dtype).itemsize
    w_isz = jnp.dtype(w_up.dtype).itemsize
    b_isz = jnp.dtype(b_up.dtype).itemsize

    # ---- alignments (v6e/v7x MXU is 2x256x256 -> prefer 256 when cheap) ----
    h_align = 256 if (gen >= 6 and _round_up(hidden, 256) - hidden <= max(hidden // 8, 0)) else 128
    tk_align = 256 if (gen >= 6 and _round_up(inter, 256) - inter <= max(inter // 8, 0)) else 128
    hidden_p = _round_up(hidden, h_align)

    # ---- generation-aware default tiles ------------------------------------
    if tm is None:
        tm = {5: 512, 6: 1024, 7: 768}.get(gen, 768)
    if tk is None:
        tk = {5: 512, 6: 512, 7: 256}.get(gen, 256)

    tm_eff = _round_up(min(tm, _round_up(n, 16)), 16)        # row tile
    tk_eff = _round_up(min(tk, _round_up(inter, tk_align)), tk_align)

    # v7x has 2 TensorCores: keep >= 2 row tiles for the "parallel" axis when
    # the batch is big enough, otherwise one core idles.
    if gen >= 7 and n >= 512 and _round_up(n, tm_eff) // tm_eff < 2:
        tm_eff = _round_up(-(-n // 2), 16)

    use_scratch = x.dtype != jnp.float32          # f32 outputs accumulate in-place
    buf_w = 3 if gen == 5 else 2                  # weight-chunk pipeline depth

    # ---- VMEM footprint model (includes temporaries) & auto-shrink ---------
    def _footprint(tm_e, tk_e, bw):
        inter_pp = _round_up(inter, tk_e)
        fp = 2 * tm_e * hidden_p * x_isz              # x tile (double-buffered)
        fp += 2 * tm_e * hidden_p * x_isz             # out tile (double-buffered)
        fp += bw * 2 * hidden_p * tk_e * w_isz        # w_up + w_down chunks
        fp += 2 * (inter_pp + hidden_p) * b_isz       # bias strips
        if use_scratch:
            fp += tm_e * hidden_p * 4                 # f32 accumulator
        fp += 3 * tm_e * tk_e * 4                     # up / h / cast temporaries
        return fp

    while _footprint(tm_eff, tk_eff, buf_w) > vmem_cap and tk_eff > tk_align:
        tk_eff = max(tk_align, _round_up(tk_eff // 2, tk_align))
    if _footprint(tm_eff, tk_eff, buf_w) > vmem_cap and buf_w > 2:
        buf_w = 2
    while _footprint(tm_eff, tk_eff, buf_w) > vmem_cap and tm_eff > 256:
        tm_eff = max(256, _round_up(tm_eff // 2, 16))

    n_p = _round_up(n, tm_eff)
    inter_p = _round_up(inter, tk_eff)
    fp_final = _footprint(tm_eff, tk_eff, buf_w)
    vmem_limit = int(min(vmem_cap, max(2 * fp_final, 32 * 1024 * 1024)))

    # ---- zero-pad operands (zeros pass through the MLP math harmlessly) ----
    x_p = jnp.pad(x2, ((0, n_p - n), (0, hidden_p - hidden)))
    wu_p = jnp.pad(w_up, ((0, hidden_p - hidden), (0, inter_p - inter)))
    bu_p = jnp.pad(b_up.reshape(1, inter), ((0, 0), (0, inter_p - inter)))
    wd_p = jnp.pad(w_down, ((0, inter_p - inter), (0, hidden_p - hidden)))
    bd_p = jnp.pad(b_down.reshape(1, hidden), ((0, 0), (0, hidden_p - hidden)))

    # ---- cost estimate (weights are re-streamed once per row tile) ---------
    row_tiles = n_p // tm_eff
    cost = pl.CostEstimate(
        flops=4 * n_p * hidden_p * inter_p,            # two matmuls
        transcendentals=n_p * inter_p,                 # erf in GELU
        bytes_accessed=(
            2 * n_p * hidden_p * x_isz                 # x in + out
            + row_tiles * 2 * hidden_p * inter_p * w_isz
            + (inter_p + hidden_p) * b_isz
        ),
    )

    def _wspec(shape, index_map):
        if buf_w > 2:
            try:
                return pl.BlockSpec(shape, index_map,
                                    pipeline_mode=pl.Buffered(buf_w))
            except TypeError:
                pass
        return pl.BlockSpec(shape, index_map)

    scratch_shapes = (
        [pltpu.VMEM((tm_eff, hidden_p), jnp.float32)] if use_scratch else []
    )

    kernel = functools.partial(
        neural_mlp_kernel, tk=tk_eff, use_scratch=use_scratch
    )

    out_p = pl.pallas_call(
        kernel,
        out_shape=jax.ShapeDtypeStruct((n_p, hidden_p), x.dtype),
        grid_spec=pltpu.PrefetchScalarGridSpec(
            num_scalar_prefetch=0,
            grid=(n_p // tm_eff, inter_p // tk_eff),
            in_specs=[
                pl.BlockSpec((tm_eff, hidden_p), lambda i, k: (i, 0)),   # x rows
                _wspec((hidden_p, tk_eff), lambda i, k: (0, k)),         # w_up chunk
                pl.BlockSpec((1, inter_p), lambda i, k: (0, 0)),         # b_up (whole)
                _wspec((tk_eff, hidden_p), lambda i, k: (k, 0)),         # w_down chunk
                pl.BlockSpec((1, hidden_p), lambda i, k: (0, 0)),        # b_down
            ],
            out_specs=pl.BlockSpec((tm_eff, hidden_p), lambda i, k: (i, 0)),
            scratch_shapes=scratch_shapes,
        ),
        compiler_params=pltpu.CompilerParams(
            dimension_semantics=("parallel", "arbitrary"),
            vmem_limit_bytes=vmem_limit,
        ),
        cost_estimate=cost,
    )(x_p, wu_p, bu_p, wd_p, bd_p)

    out = out_p[:n, :hidden]
    return out.reshape(orig_shape)


def _reference(x, w_up, b_up, w_down, b_down):
    up = jnp.einsum("...h,hi->...i", x, w_up) + b_up
    h = _gelu_exact(up)
    return jnp.einsum("...i,ih->...h", h, w_down) + b_down


if __name__ == "__main__":
    # NeuralMLP(hidden_size=32, inter_size=64, act="gelu", use_bias=True, dropout=0.0)
    batch, seq, hidden, inter = 2, 8, 32, 64

    key = jax.random.PRNGKey(0)
    kx, kwu, kbu, kwd, kbd = jax.random.split(key, 5)

    x = jax.random.normal(kx, (batch, seq, hidden), dtype=jnp.float32)
    # nn.Linear weight is (out, in); we store the transpose (in, out) for the kernel.
    w_up = jax.random.normal(kwu, (hidden, inter), dtype=jnp.float32) * 0.05
    b_up = jax.random.normal(kbu, (inter,), dtype=jnp.float32) * 0.05
    w_down = jax.random.normal(kwd, (inter, hidden), dtype=jnp.float32) * 0.05
    b_down = jax.random.normal(kbd, (hidden,), dtype=jnp.float32) * 0.05

    # --- f32 path: exact vs reference (no acc scratch, in-place accumulate) --
    out = jax.block_until_ready(neural_mlp(x, w_up, b_up, w_down, b_down))
    ref = _reference(x, w_up, b_up, w_down, b_down)
    assert out.shape == x.shape and out.dtype == x.dtype
    assert jnp.allclose(out, ref, atol=1e-5, rtol=1e-5), "f32 mismatch vs reference"

    # --- ragged row count (remainder handling via padding) ------------------
    x_ragged = jax.random.normal(kx, (3, 5, hidden), dtype=jnp.float32)
    out_r = jax.block_until_ready(neural_mlp(x_ragged, w_up, b_up, w_down, b_down))
    ref_r = _reference(x_ragged, w_up, b_up, w_down, b_down)
    assert out_r.shape == x_ragged.shape
    assert jnp.allclose(out_r, ref_r, atol=1e-5, rtol=1e-5), "ragged mismatch"

    # --- bf16-weight path (half DMA, bf16 MXU, f32 acc scratch) -------------
    out_bf16 = jax.block_until_ready(
        neural_mlp(
            x.astype(jnp.bfloat16),
            w_up.astype(jnp.bfloat16),
            b_up.astype(jnp.bfloat16),
            w_down.astype(jnp.bfloat16),
            b_down.astype(jnp.bfloat16),
        )
    )
    assert out_bf16.shape == x.shape and out_bf16.dtype == jnp.bfloat16
    assert jnp.allclose(
        out_bf16.astype(jnp.float32), ref, atol=3e-2, rtol=3e-2
    ), "bf16 mismatch vs reference"

    # TODO(synk): optional fp8 weight path (per-output-channel scales) for v7x
    # inference is not implemented here.

    print("KERNEL_OK")
</pallas_src>

<mosaic_0001>
module attributes {stable_mosaic.version = 11 : i64} {
  func.func @neural_mlp_kernel(%arg0: i32, %arg1: i32, %arg2: memref<16x128xf32, #tpu.memory_space<vmem>>, %arg3: memref<128x128xf32, #tpu.memory_space<vmem>>, %arg4: memref<1x128xf32, #tpu.memory_space<vmem>>, %arg5: memref<128x128xf32, #tpu.memory_space<vmem>>, %arg6: memref<1x128xf32, #tpu.memory_space<vmem>>, %arg7: memref<16x128xf32, #tpu.memory_space<vmem>>) attributes {dimension_semantics = [#tpu.dimension_semantics<parallel>, #tpu.dimension_semantics<arbitrary>], iteration_bounds = array<i64: 1, 1>, scalar_prefetch = 0 : i64, scratch_operands = 0 : i64, tpu.core_type = #tpu.core_type<tc>, window_params = [{transform_indices = @transform_0, window_bounds = array<i64: 16, 128>}, {transform_indices = @transform_1, window_bounds = array<i64: 128, 128>}, {pipeline_mode = #tpu.pipeline_mode<synchronous>, transform_indices = @transform_2, window_bounds = array<i64: 1, 128>}, {transform_indices = @transform_3, window_bounds = array<i64: 128, 128>}, {pipeline_mode = #tpu.pipeline_mode<synchronous>, transform_indices = @transform_4, window_bounds = array<i64: 1, 128>}, {transform_indices = @transform_5, window_bounds = array<i64: 16, 128>}]} {
    %c0_i32 = arith.constant 0 : i32
    %0 = arith.cmpi eq, %arg1, %c0_i32 : i32
    %1 = arith.extui %0 : i1 to i32
    %c0_i32_0 = arith.constant 0 : i32
    %2 = arith.cmpi ne, %1, %c0_i32_0 : i32
    scf.if %2 {
      %cst_17 = arith.constant 0.000000e+00 : f32
      %28 = vector.broadcast %cst_17 : f32 to vector<16x128xf32>
      %c0_18 = arith.constant 0 : index
      %c0_19 = arith.constant 0 : index
      %29 = vector.load %arg7[%c0_18, %c0_19] : memref<16x128xf32, #tpu.memory_space<vmem>>, vector<16x128xf32>
      tpu.vector_store %arg7[%c0_18, %c0_19], %28 {strides = array<i32>} : memref<16x128xf32, #tpu.memory_space<vmem>>, vector<16x128xf32>,
    } else {
    }
    %c0 = arith.constant 0 : index
    %c0_1 = arith.constant 0 : index
    %3 = vector.load %arg2[%c0, %c0_1] : memref<16x128xf32, #tpu.memory_space<vmem>>, vector<16x128xf32>
    %c0_2 = arith.constant 0 : index
    %c0_3 = arith.constant 0 : index
    %4 = vector.load %arg3[%c0_2, %c0_3] : memref<128x128xf32, #tpu.memory_space<vmem>>, vector<128x128xf32>
    %cst = arith.constant dense<0.000000e+00> : vector<16x128xf32>
    %5 = tpu.matmul %3, %4, %cst {dimension_numbers = #tpu.dot_dimension_numbers<[1], [0], [0], [1], [0, 0, 1, 1], [], []>} : vector<16x128xf32>, vector<128x128xf32>, vector<16x128xf32> -> vector<16x128xf32>
    %c128_i32 = arith.constant 128 : i32
    %6 = arith.muli %arg1, %c128_i32 : i32
    %7 = tpu.assume_multiple %6, 128 : i32
    %c0_4 = arith.constant 0 : index
    %8 = arith.index_cast %7 : i32 to index
    %9 = vector.load %arg4[%c0_4, %8] : memref<1x128xf32, #tpu.memory_space<vmem>>, vector<1x128xf32>
    %10 = vector.broadcast %9 : vector<1x128xf32> to vector<16x128xf32>
    %11 = arith.addf %5, %10 : vector<16x128xf32>
    %cst_5 = arith.constant 5.000000e-01 : f32
    %12 = vector.broadcast %cst_5 : f32 to vector<16x128xf32>
    %13 = arith.mulf %12, %11 : vector<16x128xf32>
    %cst_6 = arith.constant 0.707106769 : f32
    %14 = vector.broadcast %cst_6 : f32 to vector<16x128xf32>
    %15 = arith.mulf %11, %14 : vector<16x128xf32>
    %16 = math.erf %15 : vector<16x128xf32>
    %cst_7 = arith.constant 1.000000e+00 : f32
    %17 = vector.broadcast %cst_7 : f32 to vector<16x128xf32>
    %18 = arith.addf %17, %16 : vector<16x128xf32>
    %19 = arith.mulf %13, %18 : vector<16x128xf32>
    %c0_8 = arith.constant 0 : index
    %c0_9 = arith.constant 0 : index
    %20 = vector.load %arg7[%c0_8, %c0_9] : memref<16x128xf32, #tpu.memory_space<vmem>>, vector<16x128xf32>
    %c0_10 = arith.constant 0 : index
    %c0_11 = arith.constant 0 : index
    %21 = vector.load %arg5[%c0_10, %c0_11] : memref<128x128xf32, #tpu.memory_space<vmem>>, vector<128x128xf32>
    %cst_12 = arith.constant dense<0.000000e+00> : vector<16x128xf32>
    %22 = tpu.matmul %19, %21, %cst_12 {dimension_numbers = #tpu.dot_dimension_numbers<[1], [0], [0], [1], [0, 0, 1, 1], [], []>} : vector<16x128xf32>, vector<128x128xf32>, vector<16x128xf32> -> vector<16x128xf32>
    %23 = arith.addf %20, %22 : vector<16x128xf32>
    %c0_13 = arith.constant 0 : index
    %c0_14 = arith.constant 0 : index
    %24 = vector.load %arg7[%c0_13, %c0_14] : memref<16x128xf32, #tpu.memory_space<vmem>>, vector<16x128xf32>
    tpu.vector_store %arg7[%c0_13, %c0_14], %23 {strides = array<i32>} : memref<16x128xf32, #tpu.memory_space<vmem>>, vector<16x128xf32>,
    %c0_i32_15 = arith.constant 0 : i32
    %25 = arith.cmpi eq, %arg1, %c0_i32_15 : i32
    %26 = arith.extui %25 : i1 to i32
    %c0_i32_16 = arith.constant 0 : i32
    %27 = arith.cmpi ne, %26, %c0_i32_16 : i32
    scf.if %27 {
      %c0_17 = arith.constant 0 : index
      %c0_18 = arith.constant 0 : index
      %28 = vector.load %arg7[%c0_17, %c0_18] : memref<16x128xf32, #tpu.memory_space<vmem>>, vector<16x128xf32>
      %c0_19 = arith.constant 0 : index
      %c0_20 = arith.constant 0 : index
      %29 = vector.load %arg6[%c0_19, %c0_20] : memref<1x128xf32, #tpu.memory_space<vmem>>, vector<1x128xf32>
      %30 = vector.broadcast %29 : vector<1x128xf32> to vector<16x128xf32>
      %31 = arith.addf %28, %30 : vector<16x128xf32>
      %c0_21 = arith.constant 0 : index
      %c0_22 = arith.constant 0 : index
      %32 = vector.load %arg7[%c0_21, %c0_22] : memref<16x128xf32, #tpu.memory_space<vmem>>, vector<16x128xf32>
      tpu.vector_store %arg7[%c0_21, %c0_22], %31 {strides = array<i32>} : memref<16x128xf32, #tpu.memory_space<vmem>>, vector<16x128xf32>,
    } else {
    }
    return
  }
  func.func @transform_0(%arg0: i32, %arg1: i32) -> (i32, i32) {
    %c0_i32 = arith.constant 0 : i32
    %c0_i32_0 = arith.constant 0 : i32
    return %arg0, %c0_i32 : i32, i32
  }
  func.func @transform_1(%arg0: i32, %arg1: i32) -> (i32, i32) {
    %c0_i32 = arith.constant 0 : i32
    %c0_i32_0 = arith.constant 0 : i32
    return %c0_i32, %arg1 : i32, i32
  }
  func.func @transform_2(%arg0: i32, %arg1: i32) -> (i32, i32) {
    %c0_i32 = arith.constant 0 : i32
    %c0_i32_0 = arith.constant 0 : i32
    %c0_i32_1 = arith.constant 0 : i32
    return %c0_i32, %c0_i32_0 : i32, i32
  }
  func.func @transform_3(%arg0: i32, %arg1: i32) -> (i32, i32) {
    %c0_i32 = arith.constant 0 : i32
    %c0_i32_0 = arith.constant 0 : i32
    return %arg1, %c0_i32 : i32, i32
  }
  func.func @transform_4(%arg0: i32, %arg1: i32) -> (i32, i32) {
    %c0_i32 = arith.constant 0 : i32
    %c0_i32_0 = arith.constant 0 : i32
    %c0_i32_1 = arith.constant 0 : i32
    return %c0_i32, %c0_i32_0 : i32, i32
  }
  func.func @transform_5(%arg0: i32, %arg1: i32) -> (i32, i32) {
    %c0_i32 = arith.constant 0 : i32
    %c0_i32_0 = arith.constant 0 : i32
    return %arg0, %c0_i32 : i32, i32
  }
}

</mosaic_0001>

<llo_original>
// kernel: neural_mlp.1
$region0: #{neural_mlp.1}
  #allocation0 [shape = 'u32[]', space=smem, size = 0x4, offset = 0x4, fixed_abs, tag = 'smem constant byte address 0x4 - core index']
  #allocation1 [shape = 'u32[144,128]{1,0:T(1,128)}', space=vmem, size = 0x12000, scoped, tag = 'internal scratch']
  %s0 = inlined_call_operand.vmem [shape: f32[16,128], index: 0, kind: input, shape index: {}]
  %s1 = inlined_call_operand.vmem [shape: f32[128,128], index: 1, kind: input, shape index: {}]
  %s2 = inlined_call_operand.vmem [shape: f32[1,128], index: 2, kind: input, shape index: {}]
  %s3 = inlined_call_operand.vmem [shape: f32[128,128], index: 3, kind: input, shape index: {}]
  %s4 = inlined_call_operand.vmem [shape: f32[1,128], index: 4, kind: input, shape index: {}]
  %s5 = inlined_call_operand.vmem [shape: f32[16,128], index: 5, kind: output, shape index: {}]
  %s6 = sld [smem:[#allocation0]]
  $region38: #{neural_mlp.1} parent=0
    _
  %s8 = ssub.s32 1, %s6
  %s9 = scalar_select 0, %s8, %s6
  // Predicated region
  $region2: #{neural_mlp.1} parent=0 // pred_check
    _
  $region3: #{neural_mlp.1} parent=0 // pred_check_branch
    %11 = sbr.rel (0) target = $region5
  $region4: #{neural_mlp.1} parent=0 // pred_region
    _
  $region5: #{neural_mlp.1} parent=0 // pred_fallthru
    _
  // Predicated region
  $region6: #{neural_mlp.1} parent=0 // pred_check
    _
  $region7: #{neural_mlp.1} parent=0 // pred_check_branch
    %13 = sbr.rel (0) target = $region9
  $region8: #{neural_mlp.1} parent=0 // pred_region
    _
  $region9: #{neural_mlp.1} parent=0 // pred_fallthru
    _
  // Predicated region
  $region10: #{neural_mlp.1} parent=0 // pred_check
    _
  $region11: #{neural_mlp.1} parent=0 // pred_check_branch
    %15 = sbr.rel (0) target = $region13
  $region12: #{neural_mlp.1} parent=0 // pred_region
    _
  $region13: #{neural_mlp.1} parent=0 // pred_fallthru
    _
  // Predicated region
  $region14: #{neural_mlp.1} parent=0 // pred_check
    _
  $region15: #{neural_mlp.1} parent=0 // pred_check_branch
    %17 = sbr.rel (0) target = $region17
  $region16: #{neural_mlp.1} parent=0 // pred_region
    _
  $region17: #{neural_mlp.1} parent=0 // pred_fallthru
    _
  // Predicated region
  $region18: #{neural_mlp.1} parent=0 // pred_check
    _
  $region19: #{neural_mlp.1} parent=0 // pred_check_branch
    %19 = sbr.rel (0) target = $region21
  $region20: #{neural_mlp.1} parent=0 // pred_region
    _
  $region21: #{neural_mlp.1} parent=0 // pred_fallthru
    _
  %p20 = scmp.eq.s32.totalorder 0, 0
  // Predicated region
  $region22: #{neural_mlp.1} parent=0 // pred_check
    %p21 = pneg %p20
  $region23: #{neural_mlp.1} parent=0 // pred_check_branch
    %23 = sbr.rel (%p21) target = $region25
  $region24: #{neural_mlp.1} parent=0 // pred_region
    %24 = vst [vmem:[%s5] sm:$0xff] 0.0
    %25 = vst [vmem:[%s5 + $0x8] sm:$0xff] 0.0
  $region25: #{neural_mlp.1} parent=0 // pred_fallthru
    _
  %v26 = vld [vmem:[%s0] sm:$0xff]
  %v27 = vld [vmem:[%s0 + $0x8] sm:$0xff]
  %v28 = vld [vmem:[%s1] sm:$0xff]
  %v29 = vld [vmem:[%s1 + $0x8] sm:$0xff]
  %v30 = vld [vmem:[%s1 + $0x10] sm:$0xff]
  %v31 = vld [vmem:[%s1 + $0x18] sm:$0xff]
  %v32 = vld [vmem:[%s1 + $0x20] sm:$0xff]
  %v33 = vld [vmem:[%s1 + $0x28] sm:$0xff]
  %v34 = vld [vmem:[%s1 + $0x30] sm:$0xff]
  %v35 = vld [vmem:[%s1 + $0x38] sm:$0xff]
  %v36 = vld [vmem:[%s1 + $0x40] sm:$0xff]
  %v37 = vld [vmem:[%s1 + $0x48] sm:$0xff]
  %v38 = vld [vmem:[%s1 + $0x50] sm:$0xff]
  %v39 = vld [vmem:[%s1 + $0x58] sm:$0xff]
  %v40 = vld [vmem:[%s1 + $0x60] sm:$0xff]
  %v41 = vld [vmem:[%s1 + $0x68] sm:$0xff]
  %v42 = vld [vmem:[%s1 + $0x70] sm:$0xff]
  %v43 = vld [vmem:[%s1 + $0x78] sm:$0xff]
  %s44 = smul.u32 0, 128
  %s45 = sshra.s32 %s44, 7
  %s46 = sand.u32 %s44, 127
  %s47 = scalar_lea.vmem %s2, %s45
  %v48 = vld [vmem:[%s47] sm:$0x1]
  %v50 = vlaneseq
  %v51 = vshrl.u32 %v50, 7
  %v52 = vsub.s32 0, %v51
  %v53 = vrot.slane %v48, %v52
  %55 = vmatprep.subr.mxu0 0.0
  %56 = vmatpush1.msra.mxu0 %v28
  %57 = vmatprep.subr.mxu0 0.0
  %58 = vmatpush1.msra.mxu0 %v29
  %59 = vmatprep.subr.mxu0 0.0
  %60 = vmatpush1.msra.mxu0 %v30
  %61 = vmatprep.subr.mxu0 0.0
  %62 = vmatpush1.msra.mxu0 %v31
  %63 = vmatprep.subr.mxu0 0.0
  %64 = vmatpush1.msra.mxu0 %v32
  %65 = vmatprep.subr.mxu0 0.0
  %66 = vmatpush1.msra.mxu0 %v33
  %67 = vmatprep.subr.mxu0 0.0
  %68 = vmatpush1.msra.mxu0 %v34
  %69 = vmatprep.subr.mxu0 0.0
  %70 = vmatpush1.msra.mxu0 %v35
  %71 = vmatprep.subr.mxu0 0.0
  %72 = vmatpush1.msra.mxu0 %v36
  %73 = vmatprep.subr.mxu0 0.0
  %74 = vmatpush1.msra.mxu0 %v37
  %75 = vmatprep.subr.mxu0 0.0
  %76 = vmatpush1.msra.mxu0 %v38
  %77 = vmatprep.subr.mxu0 0.0
  %78 = vmatpush1.msra.mxu0 %v39
  %79 = vmatprep.subr.mxu0 0.0
  %80 = vmatpush1.msra.mxu0 %v40
  %81 = vmatprep.subr.mxu0 0.0
  %82 = vmatpush1.msra.mxu0 %v41
  %83 = vmatprep.subr.mxu0 0.0
  %84 = vmatpush1.msra.mxu0 %v42
  %85 = vmatprep.subr.mxu0 0.0
  %86 = vmatpush1.msra.mxu0 %v43
  %87 = vmatprep.subr.mxu0 0.0
  %88 = vmatpush1.msra.mxu0 0.0
  %89 = vmatprep.subr.mxu0 0.0
  %90 = vmatpush1.msra.mxu0 0.0
  %91 = vmatprep.subr.mxu0 0.0
  %92 = vmatpush1.msra.mxu0 0.0
  %93 = vmatprep.subr.mxu0 0.0
  %94 = vmatpush1.msra.mxu0 0.0
  %95 = vmatprep.subr.mxu0 0.0
  %96 = vmatpush1.msra.mxu0 0.0
  %97 = vmatprep.subr.mxu0 0.0
  %98 = vmatpush1.msra.mxu0 0.0
  %99 = vmatprep.subr.mxu0 0.0
  %100 = vmatpush1.msra.mxu0 0.0
  %101 = vmatprep.subr.mxu0 0.0
  %102 = vmatpush1.msra.mxu0 0.0
  %103 = vmatprep.subr.mxu0 0.0
  %104 = vmatpush1.msra.mxu0 0.0
  %105 = vmatprep.subr.mxu0 0.0
  %106 = vmatpush1.msra.mxu0 0.0
  %107 = vmatprep.subr.mxu0 0.0
  %108 = vmatpush1.msra.mxu0 0.0
  %109 = vmatprep.subr.mxu0 0.0
  %110 = vmatpush1.msra.mxu0 0.0
  %111 = vmatprep.subr.mxu0 0.0
  %112 = vmatpush1.msra.mxu0 0.0
  %113 = vmatprep.subr.mxu0 0.0
  %114 = vmatpush1.msra.mxu0 0.0
  %115 = vmatprep.subr.mxu0 0.0
  %116 = vmatpush1.msra.mxu0 0.0
  %117 = vmatprep.subr.mxu0 0.0
  %118 = vmatpush1.msra.mxu0 0.0
  %119 = vmatprep.mubr.f32.mxu0 0.0
  %120 = vmatmul.mubr.f32.gmra.mrb[0].mxu0 %v26
  %v121 = vpop.f32.mrb[0].mxu0
  %v122 = vadd.f32 %v53, %v121
  %v123 = vpop.f32.mrb[0].mxu0
  %124 = vmatprep.mubr.f32.mxu0 0.0
  %125 = vmatmul.mubr.f32.gmra.mrb[0].mxu0 %v27
  %v126 = vpop.f32.mrb[0].mxu0
  %v127 = vadd.f32 %v53, %v126
  %v128 = vpop.f32.mrb[0].mxu0
  %129 = vdwg.mxu0
  %v130 = vmul.f32 %v122, 0.5
  %v131 = vmul.f32 %v127, 0.5
  %v132 = vmul.f32 %v122, 0.70710677
  %v133 = vmul.f32 %v127, 0.70710677
  %v134 = verf.f32.pop %v132
  %v135 = verf.f32.pop %v133
  %v136 = vadd.f32 %v134, 1.0
  %v137 = vadd.f32 %v135, 1.0
  %v138 = vmul.f32 %v130, %v136
  %v139 = vmul.f32 %v131, %v137
  %v140 = vld [vmem:[%s5] sm:$0xff]
  %v141 = vld [vmem:[%s5 + $0x8] sm:$0xff]
  %v142 = vld [vmem:[%s3] sm:$0xff]
  %v143 = vld [vmem:[%s3 + $0x8] sm:$0xff]
  %v144 = vld [vmem:[%s3 + $0x10] sm:$0xff]
  %v145 = vld [vmem:[%s3 + $0x18] sm:$0xff]
  %v146 = vld [vmem:[%s3 + $0x20] sm:$0xff]
  %v147 = vld [vmem:[%s3 + $0x28] sm:$0xff]
  %v148 = vld [vmem:[%s3 + $0x30] sm:$0xff]
  %v149 = vld [vmem:[%s3 + $0x38] sm:$0xff]
  %v150 = vld [vmem:[%s3 + $0x40] sm:$0xff]
  %v151 = vld [vmem:[%s3 + $0x48] sm:$0xff]
  %v152 = vld [vmem:[%s3 + $0x50] sm:$0xff]
  %v153 = vld [vmem:[%s3 + $0x58] sm:$0xff]
  %v154 = vld [vmem:[%s3 + $0x60] sm:$0xff]
  %v155 = vld [vmem:[%s3 + $0x68] sm:$0xff]
  %v156 = vld [vmem:[%s3 + $0x70] sm:$0xff]
  %v157 = vld [vmem:[%s3 + $0x78] sm:$0xff]
  %158 = vmatprep.subr.mxu0 0.0
  %159 = vmatpush1.msra.mxu0 %v142
  %160 = vmatprep.subr.mxu0 0.0
  %161 = vmatpush1.msra.mxu0 %v143
  %162 = vmatprep.subr.mxu0 0.0
  %163 = vmatpush1.msra.mxu0 %v144
  %164 = vmatprep.subr.mxu0 0.0
  %165 = vmatpush1.msra.mxu0 %v145
  %166 = vmatprep.subr.mxu0 0.0
  %167 = vmatpush1.msra.mxu0 %v146
  %168 = vmatprep.subr.mxu0 0.0
  %169 = vmatpush1.msra.mxu0 %v147
  %170 = vmatprep.subr.mxu0 0.0
  %171 = vmatpush1.msra.mxu0 %v148
  %172 = vmatprep.subr.mxu0 0.0
  %173 = vmatpush1.msra.mxu0 %v149
  %174 = vmatprep.subr.mxu0 0.0
  %175 = vmatpush1.msra.mxu0 %v150
  %176 = vmatprep.subr.mxu0 0.0
  %177 = vmatpush1.msra.mxu0 %v151
  %178 = vmatprep.subr.mxu0 0.0
  %179 = vmatpush1.msra.mxu0 %v152
  %180 = vmatprep.subr.mxu0 0.0
  %181 = vmatpush1.msra.mxu0 %v153
  %182 = vmatprep.subr.mxu0 0.0
  %183 = vmatpush1.msra.mxu0 %v154
  %184 = vmatprep.subr.mxu0 0.0
  %185 = vmatpush1.msra.mxu0 %v155
  %186 = vmatprep.subr.mxu0 0.0
  %187 = vmatpush1.msra.mxu0 %v156
  %188 = vmatprep.subr.mxu0 0.0
  %189 = vmatpush1.msra.mxu0 %v157
  %190 = vmatprep.subr.mxu0 0.0
  %191 = vmatpush1.msra.mxu0 0.0
  %192 = vmatprep.subr.mxu0 0.0
  %193 = vmatpush1.msra.mxu0 0.0
  %194 = vmatprep.subr.mxu0 0.0
  %195 = vmatpush1.msra.mxu0 0.0
  %196 = vmatprep.subr.mxu0 0.0
  %197 = vmatpush1.msra.mxu0 0.0
  %198 = vmatprep.subr.mxu0 0.0
  %199 = vmatpush1.msra.mxu0 0.0
  %200 = vmatprep.subr.mxu0 0.0
  %201 = vmatpush1.msra.mxu0 0.0
  %202 = vmatprep.subr.mxu0 0.0
  %203 = vmatpush1.msra.mxu0 0.0
  %204 = vmatprep.subr.mxu0 0.0
  %205 = vmatpush1.msra.mxu0 0.0
  %206 = vmatprep.subr.mxu0 0.0
  %207 = vmatpush1.msra.mxu0 0.0
  %208 = vmatprep.subr.mxu0 0.0
  %209 = vmatpush1.msra.mxu0 0.0
  %210 = vmatprep.subr.mxu0 0.0
  %211 = vmatpush1.msra.mxu0 0.0
  %212 = vmatprep.subr.mxu0 0.0
  %213 = vmatpush1.msra.mxu0 0.0
  %214 = vmatprep.subr.mxu0 0.0
  %215 = vmatpush1.msra.mxu0 0.0
  %216 = vmatprep.subr.mxu0 0.0
  %217 = vmatpush1.msra.mxu0 0.0
  %218 = vmatprep.subr.mxu0 0.0
  %219 = vmatpush1.msra.mxu0 0.0
  %220 = vmatprep.subr.mxu0 0.0
  %221 = vmatpush1.msra.mxu0 0.0
  %222 = vmatprep.mubr.f32.mxu0 0.0
  %223 = vmatmul.mubr.f32.gmra.mrb[0].mxu0 %v138
  %v224 = vpop.f32.mrb[0].mxu0
  %v225 = vadd.f32 0.0, %v224
  %v226 = vpop.f32.mrb[0].mxu0
  %227 = vmatprep.mubr.f32.mxu0 0.0
  %228 = vmatmul.mubr.f32.gmra.mrb[0].mxu0 %v139
  %v229 = vpop.f32.mrb[0].mxu0
  %v230 = vadd.f32 0.0, %v229
  %v231 = vpop.f32.mrb[0].mxu0
  %232 = vdwg.mxu0
  %v233 = vadd.f32 %v140, %v225
  %v234 = vadd.f32 %v141, %v230
  %235 = vst [vmem:[%s5] sm:$0xff] %v233
  %236 = vst [vmem:[%s5 + $0x8] sm:$0xff] %v234
  // Predicated region
  $region26: #{neural_mlp.1} parent=0 // pred_check
    %p237 = pneg %p20
  $region27: #{neural_mlp.1} parent=0 // pred_check_branch
    %239 = sbr.rel (%p237) target = $region29
  $region28: #{neural_mlp.1} parent=0 // pred_region
    %v240 = vld [vmem:[%s5] sm:$0xff]
    %v241 = vld [vmem:[%s5 + $0x8] sm:$0xff]
    %v242 = vld [vmem:[%s4] sm:$0x1]
    %v244 = vlaneseq
    %v245 = vshrl.u32 %v244, 7
    %v246 = vsub.s32 0, %v245
    %v247 = vrot.slane %v242, %v246
    %v249 = vadd.f32 %v240, %v247
    %v250 = vadd.f32 %v241, %v247
    %251 = vst [vmem:[%s5] sm:$0xff] %v249
    %252 = vst [vmem:[%s5 + $0x8] sm:$0xff] %v250
  $region29: #{neural_mlp.1} parent=0 // pred_fallthru
    _
  // Predicated region
  $region30: #{neural_mlp.1} parent=0 // pred_check
    _
  $region31: #{neural_mlp.1} parent=0 // pred_check_branch
    %254 = sbr.rel (0) target = $region33
  $region32: #{neural_mlp.1} parent=0 // pred_region
    _
  $region33: #{neural_mlp.1} parent=0 // pred_fallthru
    _
  // Predicated region
  $region34: #{neural_mlp.1} parent=0 // pred_check
    _
  $region35: #{neural_mlp.1} parent=0 // pred_check_branch
    %256 = sbr.rel (0) target = $region37
  $region36: #{neural_mlp.1} parent=0 // pred_region
    _
  $region37: #{neural_mlp.1} parent=0 // pred_fallthru
    _

</llo_original>
